<compile_context>
chip_gen: v7x
topology: tpu7x:2x2x1
jax: 0.10.0
libtpu: 0.0.40
codegen_flags: <defaults>
</compile_context>

<pallas_src>
import math

import jax
import jax.numpy as jnp
from jax import lax
from jax.experimental import pallas as pl
from jax.experimental.pallas import tpu as pltpu


def _decoder_kernel(x_ref, w1_ref, b1_ref, w2_ref, b2_ref, o_ref):
    # Two MXU matmuls with f32 accumulation + exact (erf) GELU on the VPU/EUP.
    x = x_ref[...]
    h = jnp.dot(x, w1_ref[...], preferred_element_type=jnp.float32)
    h = h + b1_ref[...].astype(jnp.float32)                    # (1, 32) bcast
    # Exact GELU: 0.5 * h * (1 + erf(h / sqrt(2)))
    g = 0.5 * h * (1.0 + lax.erf(h * (1.0 / math.sqrt(2.0))))
    y = jnp.dot(g.astype(w2_ref.dtype), w2_ref[...],
                preferred_element_type=jnp.float32)
    y = y + b2_ref[...].astype(jnp.float32)                    # (1, D_out)
    o_ref[...] = y.astype(o_ref.dtype)


def _round_up(n, m):
    return ((n + m - 1) // m) * m


def two_layers_decoder(x, w1, b1, w2, b2, *, block_b=8192):
    """x: (B, D_in); w1: (D_in, 32); b1: (32,); w2: (32, D_out); b2: (D_out,)."""
    B, d_in = x.shape
    hidden = w1.shape[1]
    d_out = w2.shape[1]

    # Row tile: large (8K rows by default) to amortize the ~0.35 us/step grid
    # overhead and reach HBM roofline; clamped to the (8-aligned) batch size.
    tb = min(_round_up(max(block_b, 8), 8), _round_up(B, 8))
    padded_b = _round_up(B, tb)
    if padded_b != B:
        # Ragged tail: pad rows so every block is full; sliced away below.
        x = jnp.pad(x, ((0, padded_b - B), (0, 0)))

    # Biases as 2-D rows so broadcasting inside the kernel is lane-aligned.
    b1_2d = b1.reshape(1, hidden)
    b2_2d = b2.reshape(1, d_out)

    grid = (padded_b // tb,)

    x_bytes = jnp.dtype(x.dtype).itemsize
    w_bytes = jnp.dtype(w1.dtype).itemsize
    cost = pl.CostEstimate(
        flops=2 * padded_b * (d_in * hidden + hidden * d_out),
        transcendentals=padded_b * hidden,
        bytes_accessed=(padded_b * (d_in + d_out) * x_bytes
                        + (d_in * hidden + hidden + hidden * d_out + d_out)
                        * w_bytes),
    )

    out = pl.pallas_call(
        _decoder_kernel,
        out_shape=jax.ShapeDtypeStruct((padded_b, d_out), x.dtype),
        grid=grid,
        in_specs=[
            pl.BlockSpec((tb, d_in), lambda i: (i, 0)),        # x: streamed
            pl.BlockSpec((d_in, hidden), lambda i: (0, 0)),    # w1: resident
            pl.BlockSpec((1, hidden), lambda i: (0, 0)),       # b1: resident
            pl.BlockSpec((hidden, d_out), lambda i: (0, 0)),   # w2: resident
            pl.BlockSpec((1, d_out), lambda i: (0, 0)),        # b2: resident
        ],
        out_specs=pl.BlockSpec((tb, d_out), lambda i: (i, 0)),
        compiler_params=pltpu.CompilerParams(
            dimension_semantics=("parallel",)),
        cost_estimate=cost,
    )(x, w1, b1_2d, w2, b2_2d)

    return out[:B] if padded_b != B else out


def _reference(x, w1, b1, w2, b2):
    h = x @ w1 + b1
    g = 0.5 * h * (1.0 + lax.erf(h / math.sqrt(2.0)))
    return g @ w2 + b2


if __name__ == "__main__":
    key = jax.random.PRNGKey(0)
    k_x, k_w1, k_b1, k_w2, k_b2, k_x2 = jax.random.split(key, 6)

    batch, input_dim, hidden, output_dim = 8, 16, 32, 2

    x = jax.random.normal(k_x, (batch, input_dim), dtype=jnp.float32)
    # Deterministic synthetic parameters (Kaiming-uniform-like scaling).
    bound1 = 1.0 / math.sqrt(input_dim)
    bound2 = 1.0 / math.sqrt(hidden)
    w1 = jax.random.uniform(k_w1, (input_dim, hidden), jnp.float32, -bound1, bound1)
    b1 = jax.random.uniform(k_b1, (hidden,), jnp.float32, -bound1, bound1)
    w2 = jax.random.uniform(k_w2, (hidden, output_dim), jnp.float32, -bound2, bound2)
    b2 = jax.random.uniform(k_b2, (output_dim,), jnp.float32, -bound2, bound2)

    # Small batch: single grid step, no padding.
    out = two_layers_decoder(x, w1, b1, w2, b2)
    out = jax.block_until_ready(out)
    ref = _reference(x, w1, b1, w2, b2)
    assert out.shape == (batch, output_dim)
    assert jnp.allclose(out, ref, atol=1e-5, rtol=1e-5)

    # Ragged batch: exercises multi-step grid, resident weights, pad+slice tail.
    batch2 = 300
    x2 = jax.random.normal(k_x2, (batch2, input_dim), dtype=jnp.float32)
    out2 = two_layers_decoder(x2, w1, b1, w2, b2, block_b=128)
    out2 = jax.block_until_ready(out2)
    ref2 = _reference(x2, w1, b1, w2, b2)
    assert out2.shape == (batch2, output_dim)
    assert jnp.allclose(out2, ref2, atol=1e-5, rtol=1e-5)

    print("KERNEL_OK")
</pallas_src>

<mosaic_0001>
module attributes {stable_mosaic.version = 11 : i64} {
  func.func @_decoder_kernel(%arg0: i32, %arg1: memref<8x16xf32, #tpu.memory_space<vmem>>, %arg2: memref<16x32xf32, #tpu.memory_space<vmem>>, %arg3: memref<1x32xf32, #tpu.memory_space<vmem>>, %arg4: memref<32x2xf32, #tpu.memory_space<vmem>>, %arg5: memref<1x2xf32, #tpu.memory_space<vmem>>, %arg6: memref<8x2xf32, #tpu.memory_space<vmem>>) attributes {dimension_semantics = [#tpu.dimension_semantics<parallel>], iteration_bounds = array<i64: 1>, scalar_prefetch = 0 : i64, scratch_operands = 0 : i64, tpu.core_type = #tpu.core_type<tc>, window_params = [{transform_indices = @transform_0, window_bounds = array<i64: 8, 16>}, {pipeline_mode = #tpu.pipeline_mode<synchronous>, transform_indices = @transform_1, window_bounds = array<i64: 16, 32>}, {pipeline_mode = #tpu.pipeline_mode<synchronous>, transform_indices = @transform_2, window_bounds = array<i64: 1, 32>}, {pipeline_mode = #tpu.pipeline_mode<synchronous>, transform_indices = @transform_3, window_bounds = array<i64: 32, 2>}, {pipeline_mode = #tpu.pipeline_mode<synchronous>, transform_indices = @transform_4, window_bounds = array<i64: 1, 2>}, {transform_indices = @transform_5, window_bounds = array<i64: 8, 2>}]} {
    %c0 = arith.constant 0 : index
    %c0_0 = arith.constant 0 : index
    %0 = vector.load %arg1[%c0, %c0_0] : memref<8x16xf32, #tpu.memory_space<vmem>>, vector<8x16xf32>
    %c0_1 = arith.constant 0 : index
    %c0_2 = arith.constant 0 : index
    %1 = vector.load %arg2[%c0_1, %c0_2] : memref<16x32xf32, #tpu.memory_space<vmem>>, vector<16x32xf32>
    %cst = arith.constant dense<0.000000e+00> : vector<8x32xf32>
    %2 = tpu.matmul %0, %1, %cst {dimension_numbers = #tpu.dot_dimension_numbers<[1], [0], [0], [1], [0, 0, 1, 1], [], []>} : vector<8x16xf32>, vector<16x32xf32>, vector<8x32xf32> -> vector<8x32xf32>
    %c0_3 = arith.constant 0 : index
    %c0_4 = arith.constant 0 : index
    %3 = vector.load %arg3[%c0_3, %c0_4] : memref<1x32xf32, #tpu.memory_space<vmem>>, vector<1x32xf32>
    %4 = vector.broadcast %3 : vector<1x32xf32> to vector<8x32xf32>
    %5 = arith.addf %2, %4 : vector<8x32xf32>
    %cst_5 = arith.constant 5.000000e-01 : f32
    %6 = vector.broadcast %cst_5 : f32 to vector<8x32xf32>
    %7 = arith.mulf %6, %5 : vector<8x32xf32>
    %cst_6 = arith.constant 0.707106769 : f32
    %8 = vector.broadcast %cst_6 : f32 to vector<8x32xf32>
    %9 = arith.mulf %5, %8 : vector<8x32xf32>
    %10 = math.erf %9 : vector<8x32xf32>
    %cst_7 = arith.constant 1.000000e+00 : f32
    %11 = vector.broadcast %cst_7 : f32 to vector<8x32xf32>
    %12 = arith.addf %11, %10 : vector<8x32xf32>
    %13 = arith.mulf %7, %12 : vector<8x32xf32>
    %c0_8 = arith.constant 0 : index
    %c0_9 = arith.constant 0 : index
    %14 = vector.load %arg4[%c0_8, %c0_9] : memref<32x2xf32, #tpu.memory_space<vmem>>, vector<32x2xf32>
    %cst_10 = arith.constant dense<0.000000e+00> : vector<8x2xf32>
    %15 = tpu.matmul %13, %14, %cst_10 {dimension_numbers = #tpu.dot_dimension_numbers<[1], [0], [0], [1], [0, 0, 1, 1], [], []>} : vector<8x32xf32>, vector<32x2xf32>, vector<8x2xf32> -> vector<8x2xf32>
    %c0_11 = arith.constant 0 : index
    %c0_12 = arith.constant 0 : index
    %16 = vector.load %arg5[%c0_11, %c0_12] : memref<1x2xf32, #tpu.memory_space<vmem>>, vector<1x2xf32>
    %17 = vector.broadcast %16 : vector<1x2xf32> to vector<8x2xf32>
    %18 = arith.addf %15, %17 : vector<8x2xf32>
    %c0_13 = arith.constant 0 : index
    %c0_14 = arith.constant 0 : index
    %19 = vector.load %arg6[%c0_13, %c0_14] : memref<8x2xf32, #tpu.memory_space<vmem>>, vector<8x2xf32>
    tpu.vector_store %arg6[%c0_13, %c0_14], %18 {strides = array<i32>} : memref<8x2xf32, #tpu.memory_space<vmem>>, vector<8x2xf32>,
    return
  }
  func.func @transform_0(%arg0: i32) -> (i32, i32) {
    %c0_i32 = arith.constant 0 : i32
    %c0_i32_0 = arith.constant 0 : i32
    return %arg0, %c0_i32 : i32, i32
  }
  func.func @transform_1(%arg0: i32) -> (i32, i32) {
    %c0_i32 = arith.constant 0 : i32
    %c0_i32_0 = arith.constant 0 : i32
    %c0_i32_1 = arith.constant 0 : i32
    return %c0_i32, %c0_i32_0 : i32, i32
  }
  func.func @transform_2(%arg0: i32) -> (i32, i32) {
    %c0_i32 = arith.constant 0 : i32
    %c0_i32_0 = arith.constant 0 : i32
    %c0_i32_1 = arith.constant 0 : i32
    return %c0_i32, %c0_i32_0 : i32, i32
  }
  func.func @transform_3(%arg0: i32) -> (i32, i32) {
    %c0_i32 = arith.constant 0 : i32
    %c0_i32_0 = arith.constant 0 : i32
    %c0_i32_1 = arith.constant 0 : i32
    return %c0_i32, %c0_i32_0 : i32, i32
  }
  func.func @transform_4(%arg0: i32) -> (i32, i32) {
    %c0_i32 = arith.constant 0 : i32
    %c0_i32_0 = arith.constant 0 : i32
    %c0_i32_1 = arith.constant 0 : i32
    return %c0_i32, %c0_i32_0 : i32, i32
  }
  func.func @transform_5(%arg0: i32) -> (i32, i32) {
    %c0_i32 = arith.constant 0 : i32
    %c0_i32_0 = arith.constant 0 : i32
    return %arg0, %c0_i32 : i32, i32
  }
}

</mosaic_0001>

<llo_original>
// kernel: tpu_custom_call.1
$region0: #{tpu_custom_call.1}
  #allocation0 [shape = 'u32[]', space=smem, size = 0x4, offset = 0x4, fixed_abs, tag = 'smem constant byte address 0x4 - core index']
  #allocation1 [shape = 'u32[144,128]{1,0:T(1,128)}', space=vmem, size = 0x12000, scoped, tag = 'internal scratch']
  %s0 = inlined_call_operand.vmem [shape: f32[8,16], index: 0, kind: input, shape index: {}]
  %s1 = inlined_call_operand.vmem [shape: f32[16,32], index: 1, kind: input, shape index: {}]
  %s2 = inlined_call_operand.vmem [shape: f32[1,32], index: 2, kind: input, shape index: {}]
  %s3 = inlined_call_operand.vmem [shape: f32[32,2], index: 3, kind: input, shape index: {}]
  %s4 = inlined_call_operand.vmem [shape: f32[1,2], index: 4, kind: input, shape index: {}]
  %s5 = inlined_call_operand.vmem [shape: f32[8,2], index: 5, kind: output, shape index: {}]
  %s6 = sld [smem:[#allocation0]]
  $region30: #{tpu_custom_call.1} parent=0
    _
  %s8 = ssub.s32 1, %s6
  %s9 = scalar_select 0, %s8, %s6
  // Predicated region
  $region2: #{tpu_custom_call.1} parent=0 // pred_check
    _
  $region3: #{tpu_custom_call.1} parent=0 // pred_check_branch
    %11 = sbr.rel (0) target = $region5
  $region4: #{tpu_custom_call.1} parent=0 // pred_region
    _
  $region5: #{tpu_custom_call.1} parent=0 // pred_fallthru
    _
  // Predicated region
  $region6: #{tpu_custom_call.1} parent=0 // pred_check
    _
  $region7: #{tpu_custom_call.1} parent=0 // pred_check_branch
    %13 = sbr.rel (0) target = $region9
  $region8: #{tpu_custom_call.1} parent=0 // pred_region
    _
  $region9: #{tpu_custom_call.1} parent=0 // pred_fallthru
    _
  // Predicated region
  $region10: #{tpu_custom_call.1} parent=0 // pred_check
    _
  $region11: #{tpu_custom_call.1} parent=0 // pred_check_branch
    %15 = sbr.rel (0) target = $region13
  $region12: #{tpu_custom_call.1} parent=0 // pred_region
    _
  $region13: #{tpu_custom_call.1} parent=0 // pred_fallthru
    _
  // Predicated region
  $region14: #{tpu_custom_call.1} parent=0 // pred_check
    _
  $region15: #{tpu_custom_call.1} parent=0 // pred_check_branch
    %17 = sbr.rel (0) target = $region17
  $region16: #{tpu_custom_call.1} parent=0 // pred_region
    _
  $region17: #{tpu_custom_call.1} parent=0 // pred_fallthru
    _
  // Predicated region
  $region18: #{tpu_custom_call.1} parent=0 // pred_check
    _
  $region19: #{tpu_custom_call.1} parent=0 // pred_check_branch
    %19 = sbr.rel (0) target = $region21
  $region20: #{tpu_custom_call.1} parent=0 // pred_region
    _
  $region21: #{tpu_custom_call.1} parent=0 // pred_fallthru
    _
  %v20 = vld [vmem:[%s0] sm:$0xff]
  %v21 = vld [vmem:[%s1] sm:$0xff]
  %v22 = vld [vmem:[%s1 + $0x8] sm:$0xff]
  %v23 = vld [vmem:[%s2] sm:$0x1]
  %v25 = vlaneseq
  %v26 = vshrl.u32 %v25, 7
  %v27 = vsub.s32 0, %v26
  %v28 = vrot.slane %v23, %v27
  %vm30 = vcmask 130048
  %v32 = vsel %vm30, %v20, 0
  %34 = vmatprep.subr.mxu0 0.0
  %35 = vmatpush1.msra.mxu0 %v21
  %36 = vmatprep.subr.mxu0 0.0
  %37 = vmatpush1.msra.mxu0 %v22
  %38 = vmatprep.subr.mxu0 0.0
  %39 = vmatpush1.msra.mxu0 0.0
  %40 = vmatprep.subr.mxu0 0.0
  %41 = vmatpush1.msra.mxu0 0.0
  %42 = vmatprep.subr.mxu0 0.0
  %43 = vmatpush1.msra.mxu0 0.0
  %44 = vmatprep.subr.mxu0 0.0
  %45 = vmatpush1.msra.mxu0 0.0
  %46 = vmatprep.subr.mxu0 0.0
  %47 = vmatpush1.msra.mxu0 0.0
  %48 = vmatprep.subr.mxu0 0.0
  %49 = vmatpush1.msra.mxu0 0.0
  %50 = vmatprep.subr.mxu0 0.0
  %51 = vmatpush1.msra.mxu0 0.0
  %52 = vmatprep.subr.mxu0 0.0
  %53 = vmatpush1.msra.mxu0 0.0
  %54 = vmatprep.subr.mxu0 0.0
  %55 = vmatpush1.msra.mxu0 0.0
  %56 = vmatprep.subr.mxu0 0.0
  %57 = vmatpush1.msra.mxu0 0.0
  %58 = vmatprep.subr.mxu0 0.0
  %59 = vmatpush1.msra.mxu0 0.0
  %60 = vmatprep.subr.mxu0 0.0
  %61 = vmatpush1.msra.mxu0 0.0
  %62 = vmatprep.subr.mxu0 0.0
  %63 = vmatpush1.msra.mxu0 0.0
  %64 = vmatprep.subr.mxu0 0.0
  %65 = vmatpush1.msra.mxu0 0.0
  %66 = vmatprep.subr.mxu0 0.0
  %67 = vmatpush1.msra.mxu0 0.0
  %68 = vmatprep.subr.mxu0 0.0
  %69 = vmatpush1.msra.mxu0 0.0
  %70 = vmatprep.subr.mxu0 0.0
  %71 = vmatpush1.msra.mxu0 0.0
  %72 = vmatprep.subr.mxu0 0.0
  %73 = vmatpush1.msra.mxu0 0.0
  %74 = vmatprep.subr.mxu0 0.0
  %75 = vmatpush1.msra.mxu0 0.0
  %76 = vmatprep.subr.mxu0 0.0
  %77 = vmatpush1.msra.mxu0 0.0
  %78 = vmatprep.subr.mxu0 0.0
  %79 = vmatpush1.msra.mxu0 0.0
  %80 = vmatprep.subr.mxu0 0.0
  %81 = vmatpush1.msra.mxu0 0.0
  %82 = vmatprep.subr.mxu0 0.0
  %83 = vmatpush1.msra.mxu0 0.0
  %84 = vmatprep.subr.mxu0 0.0
  %85 = vmatpush1.msra.mxu0 0.0
  %86 = vmatprep.subr.mxu0 0.0
  %87 = vmatpush1.msra.mxu0 0.0
  %88 = vmatprep.subr.mxu0 0.0
  %89 = vmatpush1.msra.mxu0 0.0
  %90 = vmatprep.subr.mxu0 0.0
  %91 = vmatpush1.msra.mxu0 0.0
  %92 = vmatprep.subr.mxu0 0.0
  %93 = vmatpush1.msra.mxu0 0.0
  %94 = vmatprep.subr.mxu0 0.0
  %95 = vmatpush1.msra.mxu0 0.0
  %96 = vmatprep.subr.mxu0 0.0
  %97 = vmatpush1.msra.mxu0 0.0
  %98 = vmatprep.mubr.f32.mxu0 0.0
  %99 = vmatmul.mubr.f32.gmra.mrb[0].mxu0 %v32
  %v100 = vpop.f32.mrb[0].mxu0
  %v101 = vadd.f32 %v28, %v100
  %v102 = vpop.f32.mrb[0].mxu0
  %103 = vdwg.mxu0
  %v104 = vmul.f32 %v101, 0.5
  %v105 = vmul.f32 %v101, 0.70710677
  %v106 = verf.f32.pop %v105
  %v107 = vadd.f32 %v106, 1.0
  %v108 = vmul.f32 %v104, %v107
  %v109 = vld [vmem:[%s3] sm:$0xff]
  %v110 = vld [vmem:[%s3 + $0x8] sm:$0xff]
  %v111 = vld [vmem:[%s3 + $0x10] sm:$0xff]
  %v112 = vld [vmem:[%s3 + $0x18] sm:$0xff]
  %v113 = vld [vmem:[%s4] sm:$0x1]
  %v115 = vlaneseq
  %v116 = vshrl.u32 %v115, 7
  %v117 = vsub.s32 0, %v116
  %v118 = vrot.slane %v113, %v117
  %vm120 = vcmask 261120
  %v122 = vsel %vm120, %v108, 0
  %124 = vmatprep.subr.mxu0 0.0
  %125 = vmatpush1.msra.mxu0 %v109
  %126 = vmatprep.subr.mxu0 0.0
  %127 = vmatpush1.msra.mxu0 %v110
  %128 = vmatprep.subr.mxu0 0.0
  %129 = vmatpush1.msra.mxu0 %v111
  %130 = vmatprep.subr.mxu0 0.0
  %131 = vmatpush1.msra.mxu0 %v112
  %132 = vmatprep.subr.mxu0 0.0
  %133 = vmatpush1.msra.mxu0 0.0
  %134 = vmatprep.subr.mxu0 0.0
  %135 = vmatpush1.msra.mxu0 0.0
  %136 = vmatprep.subr.mxu0 0.0
  %137 = vmatpush1.msra.mxu0 0.0
  %138 = vmatprep.subr.mxu0 0.0
  %139 = vmatpush1.msra.mxu0 0.0
  %140 = vmatprep.subr.mxu0 0.0
  %141 = vmatpush1.msra.mxu0 0.0
  %142 = vmatprep.subr.mxu0 0.0
  %143 = vmatpush1.msra.mxu0 0.0
  %144 = vmatprep.subr.mxu0 0.0
  %145 = vmatpush1.msra.mxu0 0.0
  %146 = vmatprep.subr.mxu0 0.0
  %147 = vmatpush1.msra.mxu0 0.0
  %148 = vmatprep.subr.mxu0 0.0
  %149 = vmatpush1.msra.mxu0 0.0
  %150 = vmatprep.subr.mxu0 0.0
  %151 = vmatpush1.msra.mxu0 0.0
  %152 = vmatprep.subr.mxu0 0.0
  %153 = vmatpush1.msra.mxu0 0.0
  %154 = vmatprep.subr.mxu0 0.0
  %155 = vmatpush1.msra.mxu0 0.0
  %156 = vmatprep.subr.mxu0 0.0
  %157 = vmatpush1.msra.mxu0 0.0
  %158 = vmatprep.subr.mxu0 0.0
  %159 = vmatpush1.msra.mxu0 0.0
  %160 = vmatprep.subr.mxu0 0.0
  %161 = vmatpush1.msra.mxu0 0.0
  %162 = vmatprep.subr.mxu0 0.0
  %163 = vmatpush1.msra.mxu0 0.0
  %164 = vmatprep.subr.mxu0 0.0
  %165 = vmatpush1.msra.mxu0 0.0
  %166 = vmatprep.subr.mxu0 0.0
  %167 = vmatpush1.msra.mxu0 0.0
  %168 = vmatprep.subr.mxu0 0.0
  %169 = vmatpush1.msra.mxu0 0.0
  %170 = vmatprep.subr.mxu0 0.0
  %171 = vmatpush1.msra.mxu0 0.0
  %172 = vmatprep.subr.mxu0 0.0
  %173 = vmatpush1.msra.mxu0 0.0
  %174 = vmatprep.subr.mxu0 0.0
  %175 = vmatpush1.msra.mxu0 0.0
  %176 = vmatprep.subr.mxu0 0.0
  %177 = vmatpush1.msra.mxu0 0.0
  %178 = vmatprep.subr.mxu0 0.0
  %179 = vmatpush1.msra.mxu0 0.0
  %180 = vmatprep.subr.mxu0 0.0
  %181 = vmatpush1.msra.mxu0 0.0
  %182 = vmatprep.subr.mxu0 0.0
  %183 = vmatpush1.msra.mxu0 0.0
  %184 = vmatprep.subr.mxu0 0.0
  %185 = vmatpush1.msra.mxu0 0.0
  %186 = vmatprep.subr.mxu0 0.0
  %187 = vmatpush1.msra.mxu0 0.0
  %188 = vmatprep.mubr.f32.mxu0 0.0
  %189 = vmatmul.mubr.f32.gmra.mrb[0].mxu0 %v122
  %v190 = vpop.f32.mrb[0].mxu0
  %v191 = vadd.f32 %v118, %v190
  %v192 = vpop.f32.mrb[0].mxu0
  %193 = vdwg.mxu0
  %vm194 = vcmask 15360
  %195 = vst.msk [vmem:[%s5] sm:$0xff] %vm194, %v191
  // Predicated region
  $region22: #{tpu_custom_call.1} parent=0 // pred_check
    _
  $region23: #{tpu_custom_call.1} parent=0 // pred_check_branch
    %197 = sbr.rel (0) target = $region25
  $region24: #{tpu_custom_call.1} parent=0 // pred_region
    _
  $region25: #{tpu_custom_call.1} parent=0 // pred_fallthru
    _
  // Predicated region
  $region26: #{tpu_custom_call.1} parent=0 // pred_check
    _
  $region27: #{tpu_custom_call.1} parent=0 // pred_check_branch
    %199 = sbr.rel (0) target = $region29
  $region28: #{tpu_custom_call.1} parent=0 // pred_region
    _
  $region29: #{tpu_custom_call.1} parent=0 // pred_fallthru
    _

</llo_original>
